<compile_context>
chip_gen: v5e
topology: v5e:2x2
jax: 0.10.0
libtpu: 0.0.40
codegen_flags: <defaults>
</compile_context>

<pallas_src>
import jax
import jax.numpy as jnp
from jax.experimental import pallas as pl
from jax.experimental.pallas import tpu as pltpu


def _leaky_relu(x, slope=0.1):
    # For 0 < slope < 1, max(x, slope*x) == leaky_relu(x).  Pure VPU ops.
    return jnp.maximum(x, slope * x)


def _add_fusion_kernel(x1_ref, x2_ref, w1_ref, b1_ref, w2_ref, b2_ref, o_ref):
    # x1_ref: (1, C1, T)   x2_ref: (1, C2, T)
    # w1_ref: (Cout, C1)   b1_ref: (Cout, 1)
    # w2_ref: (Cout, C2)   b2_ref: (Cout, 1)
    # o_ref : (1, Cout, T)
    x1 = x1_ref[0]                     # (C1, T)  native dtype, cast on MXU path
    x2 = x2_ref[0]                     # (C2, T)

    # 1x1 conv == channel matmul on the MXU, f32 accumulation.
    y1 = jnp.dot(w1_ref[...], x1, preferred_element_type=jnp.float32)
    y1 = _leaky_relu(y1 + b1_ref[...].astype(jnp.float32))

    y2 = jnp.dot(w2_ref[...], x2, preferred_element_type=jnp.float32)
    y2 = _leaky_relu(y2 + b2_ref[...].astype(jnp.float32))

    o_ref[0] = _leaky_relu(y1 + y2).astype(o_ref.dtype)


def _round_up(x, m):
    return ((x + m - 1) // m) * m


def _sublane_pack(dtype):
    # Sublane packing: 8 rows/vreg at 32-bit, 16 at 16-bit, 32 at 8-bit.
    return max(8, 32 // jnp.dtype(dtype).itemsize)


def _vmem_capacity_bytes():
    """Physical per-core VMEM; falls back to the smallest current part (v7x)."""
    try:
        info = pltpu.get_tpu_info()
        cap = getattr(info, "vmem_capacity_bytes", None)
        if cap:
            return int(cap)
    except Exception:
        pass
    return 64 * 1024 * 1024


def _pick_hw_tile(hw, c1p, c2p, coutp, in_item, out_item, budget):
    """Largest multiple-of-128 spatial tile whose *real* per-step VMEM
    footprint fits `budget`:
        2 * tile * [(C1p + C2p) * in_item + Coutp * out_item]   (double-buffered streams)
      + 3 * Coutp * tile * 4                                    (f32 y1 / y2 / y1+y2)
    Channel counts are already sublane-padded by the caller."""
    hw_padded = _round_up(hw, 128)
    per_lane = 2 * ((c1p + c2p) * in_item + coutp * out_item) + 3 * coutp * 4
    tile = max(128, (budget // max(per_lane, 1)) // 128 * 128)
    return int(min(tile, hw_padded))


def _ensure_min_steps(hw_tile, hw, batch, per_lane_stream, min_steps=8):
    """Shrink the tile (halving, multiple of 128) until there are >= min_steps
    grid steps, so both v7x TensorCores get work and the pipeline can overlap.
    Floor: keep at least ~2 MiB of streamed bytes per step."""
    floor = max(128, _round_up((2 * 1024 * 1024) // max(per_lane_stream, 1), 128))
    floor = min(floor, hw_tile)
    while batch * pl.cdiv(hw, hw_tile) < min_steps and hw_tile > floor:
        hw_tile = max(floor, _round_up(max(hw_tile // 2, 128), 128))
    return hw_tile


def add_fusion(feat_2d, feat_3d, w1, b1, w2, b2, *, activation_dtype=None):
    """feat_2d: [B, C1, H, W], feat_3d: [B, C2, H, W] (same H, W).
    w1: [Cout, C1], b1: [Cout], w2: [Cout, C2], b2: [Cout].
    activation_dtype: optionally stream activations/output in a narrower dtype
    (e.g. jnp.bfloat16) for ~2x less HBM traffic; matmul accumulation and the
    leaky_relu epilogue stay f32.  Default None = keep input dtype exactly.
    Returns [B, Cout, H, W]."""
    B, C1, H, W = feat_2d.shape
    _, C2, _, _ = feat_3d.shape
    Cout = w1.shape[0]
    HW = H * W

    if activation_dtype is not None:
        feat_2d = feat_2d.astype(activation_dtype)
        feat_3d = feat_3d.astype(activation_dtype)

    x1 = feat_2d.reshape(B, C1, HW)
    x2 = feat_3d.reshape(B, C2, HW)
    b1c = b1.reshape(Cout, 1)
    b2c = b2.reshape(Cout, 1)

    out_dtype = feat_2d.dtype
    in_item = jnp.dtype(feat_2d.dtype).itemsize
    out_item = jnp.dtype(out_dtype).itemsize
    w_item = jnp.dtype(w1.dtype).itemsize

    # Sublane-padded channel counts for honest VMEM accounting.
    c1p = _round_up(C1, _sublane_pack(feat_2d.dtype))
    c2p = _round_up(C2, _sublane_pack(feat_3d.dtype))
    coutp = _round_up(Cout, _sublane_pack(out_dtype))

    # Generation-aware VMEM budget (~0.62 of physical): ≈40 MiB on v7x (64 MiB),
    # ≈79 MiB on v5e/v6e (128 MiB).  Used both as the compiler limit and as the
    # tile-sizing budget.
    vmem_cap = _vmem_capacity_bytes()
    vmem_limit = int(vmem_cap * 0.62)

    # Resident weights/biases (constant index_map, still double-buffered) are
    # subtracted from the streaming budget once.
    const_bytes = 2 * (coutp * (c1p + c2p) * w_item
                       + 2 * coutp * 128 * jnp.dtype(b1.dtype).itemsize)
    budget = max(4 * 1024 * 1024, vmem_limit - const_bytes)

    hw_tile = _pick_hw_tile(HW, c1p, c2p, coutp, in_item, out_item, budget)
    per_lane_stream = (c1p + c2p) * in_item + coutp * out_item
    hw_tile = _ensure_min_steps(hw_tile, HW, B, per_lane_stream, min_steps=8)

    grid = (B, pl.cdiv(HW, hw_tile))

    grid_spec = pltpu.PrefetchScalarGridSpec(
        num_scalar_prefetch=0,
        grid=grid,
        in_specs=[
            pl.BlockSpec((1, C1, hw_tile), lambda b, s: (b, 0, s)),
            pl.BlockSpec((1, C2, hw_tile), lambda b, s: (b, 0, s)),
            pl.BlockSpec((Cout, C1), lambda b, s: (0, 0)),   # resident weights
            pl.BlockSpec((Cout, 1), lambda b, s: (0, 0)),
            pl.BlockSpec((Cout, C2), lambda b, s: (0, 0)),
            pl.BlockSpec((Cout, 1), lambda b, s: (0, 0)),
        ],
        out_specs=pl.BlockSpec((1, Cout, hw_tile), lambda b, s: (b, 0, s)),
    )

    # Advisory cost hint: this kernel is bandwidth-bound, tell XLA.
    flops = 2 * (C1 + C2) * Cout * B * HW
    bytes_accessed = (B * HW * ((C1 + C2) * in_item + Cout * out_item)
                      + (Cout * (C1 + C2) + 2 * Cout) * w_item)
    cost = pl.CostEstimate(flops=flops, transcendentals=0,
                           bytes_accessed=bytes_accessed)

    out_flat = pl.pallas_call(
        _add_fusion_kernel,
        out_shape=jax.ShapeDtypeStruct((B, Cout, HW), out_dtype),
        grid_spec=grid_spec,
        compiler_params=pltpu.CompilerParams(
            # batch x spatial-tile: both independent -> megacore-shardable on v7x.
            dimension_semantics=("parallel", "parallel"),
            vmem_limit_bytes=vmem_limit,
        ),
        cost_estimate=cost,
    )(x1, x2, w1, b1c, w2, b2c)

    return out_flat.reshape(B, Cout, H, W)


# TODO(synk): Conv2dNormRelu's optional batch/instance norm and the 'ncm'
# (Conv1d) branch are not implemented; this covers feat_format='nchw', norm=None.
# TODO(synk): block-diagonal fusion of the two 1x1 convs (+ bias folding) is
# only worthwhile if the vex/MXU slot binds; this kernel is HBM-bound, so it
# is intentionally left out to keep lowering simple with skinny channel dims.


def _reference(feat_2d, feat_3d, w1, b1, w2, b2):
    def conv1x1_lrelu(x, w, b):
        y = jnp.einsum('oc,bchw->bohw', w, x) + b[None, :, None, None]
        return jnp.where(y >= 0, y, 0.1 * y)
    y = conv1x1_lrelu(feat_2d, w1, b1) + conv1x1_lrelu(feat_3d, w2, b2)
    return jnp.where(y >= 0, y, 0.1 * y)


if __name__ == "__main__":
    key = jax.random.PRNGKey(0)
    k1, k2, k3, k4, k5, k6 = jax.random.split(key, 6)

    B, C2D, C3D, COUT, H, W = 2, 4, 6, 8, 16, 16
    feat_2d = jax.random.normal(k1, (B, C2D, H, W), dtype=jnp.float32)
    feat_3d = jax.random.normal(k2, (B, C3D, H, W), dtype=jnp.float32)
    w1 = jax.random.normal(k3, (COUT, C2D), dtype=jnp.float32) * 0.2
    b1 = jax.random.normal(k4, (COUT,), dtype=jnp.float32) * 0.1
    w2 = jax.random.normal(k5, (COUT, C3D), dtype=jnp.float32) * 0.2
    b2 = jax.random.normal(k6, (COUT,), dtype=jnp.float32) * 0.1

    out = add_fusion(feat_2d, feat_3d, w1, b1, w2, b2)
    out = jax.block_until_ready(out)

    ref = _reference(feat_2d, feat_3d, w1, b1, w2, b2)
    assert out.shape == (B, COUT, H, W)
    assert jnp.allclose(out, ref, atol=1e-5, rtol=1e-5)

    print("KERNEL_OK")
</pallas_src>

<mosaic_0001>
module attributes {stable_mosaic.version = 11 : i64} {
  func.func @_add_fusion_kernel(%arg0: i32, %arg1: i32, %arg2: memref<1x4x256xf32, #tpu.memory_space<vmem>>, %arg3: memref<1x6x256xf32, #tpu.memory_space<vmem>>, %arg4: memref<8x4xf32, #tpu.memory_space<vmem>>, %arg5: memref<8x1xf32, #tpu.memory_space<vmem>>, %arg6: memref<8x6xf32, #tpu.memory_space<vmem>>, %arg7: memref<8x1xf32, #tpu.memory_space<vmem>>, %arg8: memref<1x8x256xf32, #tpu.memory_space<vmem>>) attributes {dimension_semantics = [#tpu.dimension_semantics<parallel>, #tpu.dimension_semantics<parallel>], iteration_bounds = array<i64: 2, 1>, scalar_prefetch = 0 : i64, scratch_operands = 0 : i64, tpu.core_type = #tpu.core_type<tc>, window_params = [{transform_indices = @transform_0, window_bounds = array<i64: 1, 4, 256>}, {transform_indices = @transform_1, window_bounds = array<i64: 1, 6, 256>}, {pipeline_mode = #tpu.pipeline_mode<synchronous>, transform_indices = @transform_2, window_bounds = array<i64: 8, 4>}, {pipeline_mode = #tpu.pipeline_mode<synchronous>, transform_indices = @transform_3, window_bounds = array<i64: 8, 1>}, {pipeline_mode = #tpu.pipeline_mode<synchronous>, transform_indices = @transform_4, window_bounds = array<i64: 8, 6>}, {pipeline_mode = #tpu.pipeline_mode<synchronous>, transform_indices = @transform_5, window_bounds = array<i64: 8, 1>}, {transform_indices = @transform_6, window_bounds = array<i64: 1, 8, 256>}]} {
    %c0 = arith.constant 0 : index
    %c0_0 = arith.constant 0 : index
    %c0_1 = arith.constant 0 : index
    %0 = vector.load %arg2[%c0, %c0_0, %c0_1] : memref<1x4x256xf32, #tpu.memory_space<vmem>>, vector<1x4x256xf32>
    %1 = vector.shape_cast %0 : vector<1x4x256xf32> to vector<4x256xf32>
    %c0_2 = arith.constant 0 : index
    %c0_3 = arith.constant 0 : index
    %c0_4 = arith.constant 0 : index
    %2 = vector.load %arg3[%c0_2, %c0_3, %c0_4] : memref<1x6x256xf32, #tpu.memory_space<vmem>>, vector<1x6x256xf32>
    %3 = vector.shape_cast %2 : vector<1x6x256xf32> to vector<6x256xf32>
    %c0_5 = arith.constant 0 : index
    %c0_6 = arith.constant 0 : index
    %4 = vector.load %arg4[%c0_5, %c0_6] : memref<8x4xf32, #tpu.memory_space<vmem>>, vector<8x4xf32>
    %cst = arith.constant dense<0.000000e+00> : vector<8x256xf32>
    %5 = tpu.matmul %4, %1, %cst {dimension_numbers = #tpu.dot_dimension_numbers<[1], [0], [0], [1], [0, 0, 1, 1], [], []>} : vector<8x4xf32>, vector<4x256xf32>, vector<8x256xf32> -> vector<8x256xf32>
    %c0_7 = arith.constant 0 : index
    %c0_8 = arith.constant 0 : index
    %6 = vector.load %arg5[%c0_7, %c0_8] : memref<8x1xf32, #tpu.memory_space<vmem>>, vector<8x1xf32>
    %7 = vector.broadcast %6 : vector<8x1xf32> to vector<8x256xf32>
    %8 = arith.addf %5, %7 : vector<8x256xf32>
    %cst_9 = arith.constant 1.000000e-01 : f32
    %9 = vector.broadcast %cst_9 : f32 to vector<8x256xf32>
    %10 = arith.mulf %9, %8 : vector<8x256xf32>
    %11 = arith.maximumf %8, %10 : vector<8x256xf32>
    %c0_10 = arith.constant 0 : index
    %c0_11 = arith.constant 0 : index
    %12 = vector.load %arg6[%c0_10, %c0_11] : memref<8x6xf32, #tpu.memory_space<vmem>>, vector<8x6xf32>
    %cst_12 = arith.constant dense<0.000000e+00> : vector<8x256xf32>
    %13 = tpu.matmul %12, %3, %cst_12 {dimension_numbers = #tpu.dot_dimension_numbers<[1], [0], [0], [1], [0, 0, 1, 1], [], []>} : vector<8x6xf32>, vector<6x256xf32>, vector<8x256xf32> -> vector<8x256xf32>
    %c0_13 = arith.constant 0 : index
    %c0_14 = arith.constant 0 : index
    %14 = vector.load %arg7[%c0_13, %c0_14] : memref<8x1xf32, #tpu.memory_space<vmem>>, vector<8x1xf32>
    %15 = vector.broadcast %14 : vector<8x1xf32> to vector<8x256xf32>
    %16 = arith.addf %13, %15 : vector<8x256xf32>
    %cst_15 = arith.constant 1.000000e-01 : f32
    %17 = vector.broadcast %cst_15 : f32 to vector<8x256xf32>
    %18 = arith.mulf %17, %16 : vector<8x256xf32>
    %19 = arith.maximumf %16, %18 : vector<8x256xf32>
    %20 = arith.addf %11, %19 : vector<8x256xf32>
    %cst_16 = arith.constant 1.000000e-01 : f32
    %21 = vector.broadcast %cst_16 : f32 to vector<8x256xf32>
    %22 = arith.mulf %21, %20 : vector<8x256xf32>
    %23 = arith.maximumf %20, %22 : vector<8x256xf32>
    %c0_17 = arith.constant 0 : index
    %c0_18 = arith.constant 0 : index
    %c0_19 = arith.constant 0 : index
    %24 = vector.load %arg8[%c0_17, %c0_18, %c0_19] : memref<1x8x256xf32, #tpu.memory_space<vmem>>, vector<1x8x256xf32>
    %25 = vector.shape_cast %24 : vector<1x8x256xf32> to vector<8x256xf32>
    %26 = vector.shape_cast %23 : vector<8x256xf32> to vector<1x8x256xf32>
    tpu.vector_store %arg8[%c0_17, %c0_18, %c0_19], %26 {strides = array<i32>} : memref<1x8x256xf32, #tpu.memory_space<vmem>>, vector<1x8x256xf32>,
    return
  }
  func.func @transform_0(%arg0: i32, %arg1: i32) -> (i32, i32, i32) {
    %c0_i32 = arith.constant 0 : i32
    %c0_i32_0 = arith.constant 0 : i32
    return %arg0, %c0_i32, %arg1 : i32, i32, i32
  }
  func.func @transform_1(%arg0: i32, %arg1: i32) -> (i32, i32, i32) {
    %c0_i32 = arith.constant 0 : i32
    %c0_i32_0 = arith.constant 0 : i32
    return %arg0, %c0_i32, %arg1 : i32, i32, i32
  }
  func.func @transform_2(%arg0: i32, %arg1: i32) -> (i32, i32) {
    %c0_i32 = arith.constant 0 : i32
    %c0_i32_0 = arith.constant 0 : i32
    %c0_i32_1 = arith.constant 0 : i32
    return %c0_i32, %c0_i32_0 : i32, i32
  }
  func.func @transform_3(%arg0: i32, %arg1: i32) -> (i32, i32) {
    %c0_i32 = arith.constant 0 : i32
    %c0_i32_0 = arith.constant 0 : i32
    %c0_i32_1 = arith.constant 0 : i32
    return %c0_i32, %c0_i32_0 : i32, i32
  }
  func.func @transform_4(%arg0: i32, %arg1: i32) -> (i32, i32) {
    %c0_i32 = arith.constant 0 : i32
    %c0_i32_0 = arith.constant 0 : i32
    %c0_i32_1 = arith.constant 0 : i32
    return %c0_i32, %c0_i32_0 : i32, i32
  }
  func.func @transform_5(%arg0: i32, %arg1: i32) -> (i32, i32) {
    %c0_i32 = arith.constant 0 : i32
    %c0_i32_0 = arith.constant 0 : i32
    %c0_i32_1 = arith.constant 0 : i32
    return %c0_i32, %c0_i32_0 : i32, i32
  }
  func.func @transform_6(%arg0: i32, %arg1: i32) -> (i32, i32, i32) {
    %c0_i32 = arith.constant 0 : i32
    %c0_i32_0 = arith.constant 0 : i32
    return %arg0, %c0_i32, %arg1 : i32, i32, i32
  }
}

</mosaic_0001>

<llo_original>
// kernel: tpu_custom_call.1
$region0: #{tpu_custom_call.1}
  #allocation0 [shape = 'u32[]', space=smem, size = 0x4, offset = 0x4, fixed_abs, tag = 'smem constant byte address 0x4 - core index']
  #allocation1 [shape = 'u32[72,128]{1,0:T(1,128)}', space=vmem, size = 0x9000, scoped, tag = 'internal scratch']
  %s0 = inlined_call_operand.vmem [shape: f32[2,4,256], index: 0, kind: input, shape index: {}]
  %s1 = inlined_call_operand.vmem [shape: f32[2,6,256], index: 1, kind: input, shape index: {}]
  %s2 = inlined_call_operand.vmem [shape: f32[8,4], index: 2, kind: input, shape index: {}]
  %s3 = inlined_call_operand.vmem [shape: f32[8,1], index: 3, kind: input, shape index: {}]
  %s4 = inlined_call_operand.vmem [shape: f32[8,6], index: 4, kind: input, shape index: {}]
  %s5 = inlined_call_operand.vmem [shape: f32[8,1], index: 5, kind: input, shape index: {}]
  %s6 = inlined_call_operand.hbm [shape: f32[2,8,256], index: 6, kind: output, shape index: {}]
  %s7 = sld [smem:[#allocation0]]
  $region57: #{tpu_custom_call.1} parent=0
    _
  %s9 = ssub.s32 1, %s7
  %s10 = scalar_select 0, %s9, %s7
  $region1: #{tpu_custom_call.1} parent=0
    #allocation2 [shape = 'u8[16384]{0}', space=vmem, size = 0x4000, scoped, tag = 'output window, operand 0']
    #allocation3 [shape = 's32[2]{0}', space=sflag, size = 0x8, scoped, tag = 'scoped memory for tpu_custom_call.1']
    %11 = vsyncpa [#allocation3], 0
    %s12 = scalar_lea.sflag [#allocation3], 1
    %13 = vsyncpa %s12, 0
    loop: start=0, step=1, limit=4
    $region2: #{tpu_custom_call.1} parent=1 // loop_pre_header
      _
    $region3: #{tpu_custom_call.1} parent=1 // loop_header
      %s15 = sphi 0, %s19
      %p16 = scmp.ge.s32.totalorder %s15, 4
      %s22 = sphi 0, %s34
      %s23 = sphi 0, %s30
      %s24 = sphi 0, %s22
      %s25 = sphi 0, %s23
      %s26 = sphi 0, %s24
      %s27 = sphi 0, %s25
      %s39 = sphi 0, %s41
      %s42 = sphi 0, %s39
      %s43 = sphi 0, %s42
      %s59 = sphi 0, %s43
      %s67 = sphi 0, %s69
      %s70 = sphi 0, %s67
      %s71 = sphi 0, %s70
      %s87 = sphi 0, %s71
      %s91 = sphi 0, %s91
      %s93 = sphi 0, %s91
      %s94 = sphi 0, %s93
      %s108 = sphi 0, %s94
      %s112 = sphi 0, %s112
      %s114 = sphi 0, %s112
      %s115 = sphi 0, %s114
      %s129 = sphi 0, %s115
      %s133 = sphi 0, %s133
      %s135 = sphi 0, %s133
      %s136 = sphi 0, %s135
      %s150 = sphi 0, %s136
      %s154 = sphi 0, %s154
      %s156 = sphi 0, %s154
      %s157 = sphi 0, %s156
      %s171 = sphi 0, %s157
      %s179 = sphi 0, %s181
      %s182 = sphi 0, %s179
      %s183 = sphi 0, %s182
      %s199 = sphi 0, %s183
    $region4: #{tpu_custom_call.1} parent=1 // loop_header_branch
      %18 = sbr.rel (%p16) target = $region8
    $region5: #{tpu_custom_call.1} parent=1 // loop_body
      %s20 = ssub.s32 %s15, 1
      %s21 = ssub.s32 %s15, 2
      %s28 = sadd.s32 1, %s23
      %p29 = scmp.ge.s32.totalorder %s28, 1
      %s30 = scalar_select %p29, 0, %s28
      %s31 = sadd.s32 1, %s22
      %s32 = scalar_select %p29, %s31, %s22
      %p33 = scmp.ge.s32.totalorder %s32, 2
      %s34 = scalar_select %p33, 0, %s32
      %s35 = ssub.s32 %s22, %s34
      %s36 = ssub.s32 %s23, %s30
      %s37 = sor.u32 %s35, %s36
      %p38 = scmp.eq.s32.totalorder %s37, 0
      %s40 = sadd.s32 %s39, 1
      %s41 = scalar_select %p38, %s39, %s40
      %p44 = pneg %p38
      %p45 = scmp.eq.s32.totalorder %s15, 1
      %p46 = por %p44, %p45
      %p47 = scmp.ne.s32.totalorder %s39, %s42
      %p48 = scmp.eq.s32.totalorder %s15, 0
      %p49 = por %p47, %p48
      %p50 = scmp.ne.s32.totalorder %s39, %s42
      %p51 = scmp.eq.s32.totalorder %s20, 1
      %p52 = por %p50, %p51
      %p53 = scmp.ne.s32.totalorder %s42, %s43
      %p54 = scmp.eq.s32.totalorder %s20, 0
      %p55 = por %p53, %p54
      %p56 = scmp.ne.s32.totalorder %s42, %s43
      %p57 = scmp.eq.s32.totalorder %s21, 1
      %p58 = por %p56, %p57
      %p60 = scmp.ne.s32.totalorder %s43, %s59
      %p61 = scmp.eq.s32.totalorder %s21, 0
      %p62 = por %p60, %p61
      %s63 = ssub.s32 %s22, %s34
      %s64 = ssub.s32 %s23, %s30
      %s65 = sor.u32 %s63, %s64
      %p66 = scmp.eq.s32.totalorder %s65, 0
      %s68 = sadd.s32 %s67, 1
      %s69 = scalar_select %p66, %s67, %s68
      %p72 = pneg %p66
      %p73 = scmp.eq.s32.totalorder %s15, 1
      %p74 = por %p72, %p73
      %p75 = scmp.ne.s32.totalorder %s67, %s70
      %p76 = scmp.eq.s32.totalorder %s15, 0
      %p77 = por %p75, %p76
      %p78 = scmp.ne.s32.totalorder %s67, %s70
      %p79 = scmp.eq.s32.totalorder %s20, 1
      %p80 = por %p78, %p79
      %p81 = scmp.ne.s32.totalorder %s70, %s71
      %p82 = scmp.eq.s32.totalorder %s20, 0
      %p83 = por %p81, %p82
      %p84 = scmp.ne.s32.totalorder %s70, %s71
      %p85 = scmp.eq.s32.totalorder %s21, 1
      %p86 = por %p84, %p85
      %p88 = scmp.ne.s32.totalorder %s71, %s87
      %p89 = scmp.eq.s32.totalorder %s21, 0
      %p90 = por %p88, %p89
      %s92 = sadd.s32 %s91, 1
      %p95 = scmp.eq.s32.totalorder %s15, 1
      %p96 = scmp.ne.s32.totalorder %s91, %s93
      %p97 = scmp.eq.s32.totalorder %s15, 0
      %p98 = por %p96, %p97
      %p99 = scmp.ne.s32.totalorder %s91, %s93
      %p100 = scmp.eq.s32.totalorder %s20, 1
      %p101 = por %p99, %p100
      %p102 = scmp.ne.s32.totalorder %s93, %s94
      %p103 = scmp.eq.s32.totalorder %s20, 0
      %p104 = por %p102, %p103
      %p105 = scmp.ne.s32.totalorder %s93, %s94
      %p106 = scmp.eq.s32.totalorder %s21, 1
      %p107 = por %p105, %p106
      %p109 = scmp.ne.s32.totalorder %s94, %s108
      %p110 = scmp.eq.s32.totalorder %s21, 0
      %p111 = por %p109, %p110
      %s113 = sadd.s32 %s112, 1
      %p116 = scmp.eq.s32.totalorder %s15, 1
      %p117 = scmp.ne.s32.totalorder %s112, %s114
      %p118 = scmp.eq.s32.totalorder %s15, 0
      %p119 = por %p117, %p118
      %p120 = scmp.ne.s32.totalorder %s112, %s114
      %p121 = scmp.eq.s32.totalorder %s20, 1
      %p122 = por %p120, %p121
      %p123 = scmp.ne.s32.totalorder %s114, %s115
      %p124 = scmp.eq.s32.totalorder %s20, 0
      %p125 = por %p123, %p124
      %p126 = scmp.ne.s32.totalorder %s114, %s115
      %p127 = scmp.eq.s32.totalorder %s21, 1
      %p128 = por %p126, %p127
      %p130 = scmp.ne.s32.totalorder %s115, %s129
      %p131 = scmp.eq.s32.totalorder %s21, 0
      %p132 = por %p130, %p131
      %s134 = sadd.s32 %s133, 1
      %p137 = scmp.eq.s32.totalorder %s15, 1
      %p138 = scmp.ne.s32.totalorder %s133, %s135
      %p139 = scmp.eq.s32.totalorder %s15, 0
      %p140 = por %p138, %p139
      %p141 = scmp.ne.s32.totalorder %s133, %s135
      %p142 = scmp.eq.s32.totalorder %s20, 1
      %p143 = por %p141, %p142
      %p144 = scmp.ne.s32.totalorder %s135, %s136
      %p145 = scmp.eq.s32.totalorder %s20, 0
      %p146 = por %p144, %p145
      %p147 = scmp.ne.s32.totalorder %s135, %s136
      %p148 = scmp.eq.s32.totalorder %s21, 1
      %p149 = por %p147, %p148
      %p151 = scmp.ne.s32.totalorder %s136, %s150
      %p152 = scmp.eq.s32.totalorder %s21, 0
      %p153 = por %p151, %p152
      %s155 = sadd.s32 %s154, 1
      %p158 = scmp.eq.s32.totalorder %s15, 1
      %p159 = scmp.ne.s32.totalorder %s154, %s156
      %p160 = scmp.eq.s32.totalorder %s15, 0
      %p161 = por %p159, %p160
      %p162 = scmp.ne.s32.totalorder %s154, %s156
      %p163 = scmp.eq.s32.totalorder %s20, 1
      %p164 = por %p162, %p163
      %p165 = scmp.ne.s32.totalorder %s156, %s157
      %p166 = scmp.eq.s32.totalorder %s20, 0
      %p167 = por %p165, %p166
      %p168 = scmp.ne.s32.totalorder %s156, %s157
      %p169 = scmp.eq.s32.totalorder %s21, 1
      %p170 = por %p168, %p169
      %p172 = scmp.ne.s32.totalorder %s157, %s171
      %p173 = scmp.eq.s32.totalorder %s21, 0
      %p174 = por %p172, %p173
      %s175 = ssub.s32 %s22, %s34
      %s176 = ssub.s32 %s23, %s30
      %s177 = sor.u32 %s175, %s176
      %p178 = scmp.eq.s32.totalorder %s177, 0
      %s180 = sadd.s32 %s179, 1
      %s181 = scalar_select %p178, %s179, %s180
      %p184 = pneg %p178
      %p185 = scmp.eq.s32.totalorder %s15, 1
      %p186 = por %p184, %p185
      %p187 = scmp.ne.s32.totalorder %s179, %s182
      %p188 = scmp.eq.s32.totalorder %s15, 0
      %p189 = por %p187, %p188
      %p190 = scmp.ne.s32.totalorder %s179, %s182
      %p191 = scmp.eq.s32.totalorder %s20, 1
      %p192 = por %p190, %p191
      %p193 = scmp.ne.s32.totalorder %s182, %s183
      %p194 = scmp.eq.s32.totalorder %s20, 0
      %p195 = por %p193, %p194
      %p196 = scmp.ne.s32.totalorder %s182, %s183
      %p197 = scmp.eq.s32.totalorder %s21, 1
      %p198 = por %p196, %p197
      %p200 = scmp.ne.s32.totalorder %s183, %s199
      %p201 = scmp.eq.s32.totalorder %s21, 0
      %p202 = por %p200, %p201
      %p203 = scmp.le.s32.totalorder 1, %s15
      %p204 = scmp.lt.s32.totalorder %s15, 3
      %p205 = pnand %p203, %p204
      %p206 = pneg %p205
      // Predicated region
      $region9: #{tpu_custom_call.1} parent=5 // pred_check
        _
      $region10: #{tpu_custom_call.1} parent=5 // pred_check_branch
        %208 = sbr.rel (%p205) target = $region12
      $region11: #{tpu_custom_call.1} parent=5 // pred_region
        %s209 = ssub.s32 %s15, 1
        // Predicated region
        $region13: #{tpu_custom_call.1} parent=11 // pred_check
          %p210 = pneg %p104
        $region14: #{tpu_custom_call.1} parent=11 // pred_check_branch
          %212 = sbr.rel (%p210) target = $region16
        $region15: #{tpu_custom_call.1} parent=11 // pred_region
          _
        $region16: #{tpu_custom_call.1} parent=11 // pred_fallthru
          _
        // Predicated region
        $region17: #{tpu_custom_call.1} parent=11 // pred_check
          %p213 = pneg %p125
        $region18: #{tpu_custom_call.1} parent=11 // pred_check_branch
          %215 = sbr.rel (%p213) target = $region20
        $region19: #{tpu_custom_call.1} parent=11 // pred_region
          _
        $region20: #{tpu_custom_call.1} parent=11 // pred_fallthru
          _
        // Predicated region
        $region21: #{tpu_custom_call.1} parent=11 // pred_check
          %p216 = pneg %p146
        $region22: #{tpu_custom_call.1} parent=11 // pred_check_branch
          %218 = sbr.rel (%p216) target = $region24
        $region23: #{tpu_custom_call.1} parent=11 // pred_region
          _
        $region24: #{tpu_custom_call.1} parent=11 // pred_fallthru
          _
        // Predicated region
        $region25: #{tpu_custom_call.1} parent=11 // pred_check
          %p219 = pneg %p167
        $region26: #{tpu_custom_call.1} parent=11 // pred_check_branch
          %221 = sbr.rel (%p219) target = $region28
        $region27: #{tpu_custom_call.1} parent=11 // pred_region
          _
        $region28: #{tpu_custom_call.1} parent=11 // pred_fallthru
          _
      $region12: #{tpu_custom_call.1} parent=5 // pred_fallthru
        _
      %p222 = scmp.lt.s32.totalorder %s15, 2
      // Predicated region
      $region29: #{tpu_custom_call.1} parent=5 // pred_check
        %p223 = pneg %p222
      $region30: #{tpu_custom_call.1} parent=5 // pred_check_branch
        %225 = sbr.rel (%p223) target = $region32
      $region31: #{tpu_custom_call.1} parent=5 // pred_region
        // Predicated region
        $region33: #{tpu_custom_call.1} parent=31 // pred_check
          %p226 = pneg %p49
        $region34: #{tpu_custom_call.1} parent=31 // pred_check_branch
          %228 = sbr.rel (%p226) target = $region36
        $region35: #{tpu_custom_call.1} parent=31 // pred_region
          %s229 = smul.u32 2, %s23
          %p230 = scmp.lt.s32.totalorder %s22, 1
          %s231 = scalar_select %p230, %s22, 1
          %p232 = scmp.lt.s32.totalorder %s229, 1
          %s233 = scalar_select %p232, %s229, 1
          %s234 = smul.addr %s231, 2
          %s235 = sadd.s32 %s233, %s234
          %s236 = smul.addr %s235, 4
          %s237 = scalar_lea.vmem %s0, %s236
          %s238 = smul.u32 2, %s23
        $region36: #{tpu_custom_call.1} parent=31 // pred_fallthru
          _
        // Predicated region
        $region37: #{tpu_custom_call.1} parent=31 // pred_check
          %p239 = pneg %p77
        $region38: #{tpu_custom_call.1} parent=31 // pred_check_branch
          %241 = sbr.rel (%p239) target = $region40
        $region39: #{tpu_custom_call.1} parent=31 // pred_region
          %s242 = smul.u32 2, %s23
          %p243 = scmp.lt.s32.totalorder %s22, 1
          %s244 = scalar_select %p243, %s22, 1
          %p245 = scmp.lt.s32.totalorder %s242, 1
          %s246 = scalar_select %p245, %s242, 1
          %s247 = smul.addr %s244, 2
          %s248 = sadd.s32 %s246, %s247
          %s249 = smul.addr %s248, 8
          %s250 = scalar_lea.vmem %s1, %s249
          %s251 = smul.u32 2, %s23
        $region40: #{tpu_custom_call.1} parent=31 // pred_fallthru
          _
      $region32: #{tpu_custom_call.1} parent=5 // pred_fallthru
        _
      %p252 = scmp.le.s32.totalorder 1, %s15
      %p253 = scmp.lt.s32.totalorder %s15, 3
      %p254 = pnand %p252, %p253
      %p255 = pneg %p254
      // Predicated region
      $region41: #{tpu_custom_call.1} parent=5 // pred_check
        _
      $region42: #{tpu_custom_call.1} parent=5 // pred_check_branch
        %257 = sbr.rel (%p254) target = $region44
      $region43: #{tpu_custom_call.1} parent=5 // pred_region
        %s258 = ssub.s32 %s15, 1
        %s259 = smul.u32 2, %s25
        %p260 = scmp.lt.s32.totalorder %s24, 1
        %s261 = scalar_select %p260, %s24, 1
        %p262 = scmp.lt.s32.totalorder %s259, 1
        %s263 = scalar_select %p262, %s259, 1
        %s264 = smul.addr %s261, 2
        %s265 = sadd.s32 %s263, %s264
        %s266 = smul.addr %s265, 4
        %s267 = scalar_lea.vmem %s0, %s266
        %p268 = pneg %p55
        %p269 = pneg %p52
        %s270 = smul.u32 2, %s25
        %p271 = scmp.lt.s32.totalorder %s24, 1
        %s272 = scalar_select %p271, %s24, 1
        %p273 = scmp.lt.s32.totalorder %s270, 1
        %s274 = scalar_select %p273, %s270, 1
        %s275 = smul.addr %s272, 2
        %s276 = sadd.s32 %s274, %s275
        %s277 = smul.addr %s276, 8
        %s278 = scalar_lea.vmem %s1, %s277
        %p279 = pneg %p83
        %p280 = pneg %p80
        %p281 = pneg %p104
        %p282 = pneg %p101
        %p283 = pneg %p125
        %p284 = pneg %p122
        %p285 = pneg %p146
        %p286 = pneg %p143
        %p287 = pneg %p167
        %p288 = pneg %p164
        %p289 = pneg %p195
        %p290 = pneg %p192
        %s291 = sand.u32 %s182, 1
        %s292 = scalar_lea.sflag [#allocation3], %s291
        %s293 = sand.u32 %s182, 1
        %s294 = smul.addr %s293, 16
        %s295 = scalar_lea.vmem [#allocation2], %s294
        %s296 = smul.u32 2, %s25
        %p297 = scmp.lt.s32.totalorder %s24, 1
        %s298 = scalar_select %p297, %s24, 1
        %p299 = scmp.lt.s32.totalorder %s296, 1
        %s300 = scalar_select %p299, %s296, 1
        %s301 = smul.addr %s298, 2
        %s302 = sadd.s32 %s300, %s301
        %s303 = smul.addr %s302, 4
        %s304 = scalar_lea.vmem %s0, %s303
        %s305 = smul.u32 2, %s25
        %s306 = smul.u32 2, %s25
        %p307 = scmp.lt.s32.totalorder %s24, 1
        %s308 = scalar_select %p307, %s24, 1
        %p309 = scmp.lt.s32.totalorder %s306, 1
        %s310 = scalar_select %p309, %s306, 1
        %s311 = smul.addr %s308, 2
        %s312 = sadd.s32 %s310, %s311
        %s313 = smul.addr %s312, 8
        %s314 = scalar_lea.vmem %s1, %s313
        %s315 = smul.u32 2, %s25
        %s316 = smul.u32 2, %s25
        %v317 = vld [vmem:[%s304] sm:$0xff]
        %v318 = vld [vmem:[%s314] sm:$0x3f]
        %v319 = vld [vmem:[%s314 + $0x8] sm:$0x3f]
        %v320 = vld [vmem:[%s2] sm:$0xff]
        %v321 = vld [vmem:[%s3] sm:$0xff]
        %323 = vset.pattern.permute.xlu0 0
        %324 = vperm.xlu0 %323, %v321
        %v325 = vpop.permute.xlu0 %324
        %328 = vst [vmem:[#allocation1] ss:$2 sm:$0xff] %v317
        %v329 = vld.sshfl [vmem:[#allocation1] sm:$0xff pattern:$0x75316420]
        %v330 = vld.sshfl [vmem:[#allocation1 + $0x8] sm:$0xff pattern:$0x75316420]
        %vm331 = vcmask 31744
        %v333 = vsel %vm331, %v320, 0
        %vm335 = vcmask 1043456
        %v336 = vsel %vm335, %v329, 0
        %v338 = vsel %vm335, %v330, 0
        %340 = vmatpush.msra.mxu0 0.0
        %341 = vmatpush.msra.mxu0 0.0
        %342 = vmatpush.msra.mxu0 0.0
        %343 = vmatpush.msra.mxu0 0.0
        %344 = vmatpush.msra.mxu0 0.0
        %345 = vmatpush.msra.mxu0 0.0
        %346 = vmatpush.msra.mxu0 0.0
        %347 = vmatpush.msra.mxu0 0.0
        %348 = vmatpush.msra.mxu0 0.0
        %349 = vmatpush.msra.mxu0 0.0
        %350 = vmatpush.msra.mxu0 0.0
        %351 = vmatpush.msra.mxu0 0.0
        %352 = vmatpush.msra.mxu0 0.0
        %353 = vmatpush.msra.mxu0 0.0
        %354 = vmatpush.msra.mxu0 0.0
        %355 = vmatpush.msra.mxu0 %v336
        %356 = vmatmul.f32.gmra.mxu0 %v333
        %v357 = vpop.f32.mrf.mxu0
        %v358 = vadd.f32 %v325, %v357
        %359 = vdwg.mxu0
        %360 = vmatpush.msra.mxu0 0.0
        %361 = vmatpush.msra.mxu0 0.0
        %362 = vmatpush.msra.mxu0 0.0
        %363 = vmatpush.msra.mxu0 0.0
        %364 = vmatpush.msra.mxu0 0.0
        %365 = vmatpush.msra.mxu0 0.0
        %366 = vmatpush.msra.mxu0 0.0
        %367 = vmatpush.msra.mxu0 0.0
        %368 = vmatpush.msra.mxu0 0.0
        %369 = vmatpush.msra.mxu0 0.0
        %370 = vmatpush.msra.mxu0 0.0
        %371 = vmatpush.msra.mxu0 0.0
        %372 = vmatpush.msra.mxu0 0.0
        %373 = vmatpush.msra.mxu0 0.0
        %374 = vmatpush.msra.mxu0 0.0
        %375 = vmatpush.msra.mxu0 %v338
        %376 = vmatmul.f32.gmra.mxu0 %v333
        %v377 = vpop.f32.mrf.mxu0
        %v378 = vadd.f32 %v325, %v377
        %379 = vdwg.mxu0
        %v380 = vmul.f32 %v358, 0.1
        %v381 = vmul.f32 %v378, 0.1
        %v382 = vmax.f32 %v358, %v380
        %v383 = vmax.f32 %v378, %v381
        %v384 = vld [vmem:[%s4] sm:$0xff]
        %v385 = vld [vmem:[%s5] sm:$0xff]
        %387 = vset.pattern.permute.xlu0 0
        %388 = vperm.xlu0 %387, %v385
        %v389 = vpop.permute.xlu0 %388
        %vm391 = vcmask 48128
        %v393 = vsel %vm391, %v384, 0
        %vm395 = vcmask 1045504
        %v397 = vsel %vm395, %v318, 0
        %v400 = vsel %vm395, %v319, 0
        %402 = vmatpush.msra.mxu0 0.0
        %403 = vmatpush.msra.mxu0 0.0
        %404 = vmatpush.msra.mxu0 0.0
        %405 = vmatpush.msra.mxu0 0.0
        %406 = vmatpush.msra.mxu0 0.0
        %407 = vmatpush.msra.mxu0 0.0
        %408 = vmatpush.msra.mxu0 0.0
        %409 = vmatpush.msra.mxu0 0.0
        %410 = vmatpush.msra.mxu0 0.0
        %411 = vmatpush.msra.mxu0 0.0
        %412 = vmatpush.msra.mxu0 0.0
        %413 = vmatpush.msra.mxu0 0.0
        %414 = vmatpush.msra.mxu0 0.0
        %415 = vmatpush.msra.mxu0 0.0
        %416 = vmatpush.msra.mxu0 0.0
        %417 = vmatpush.msra.mxu0 %v397
        %418 = vmatmul.f32.gmra.mxu0 %v393
        %v419 = vpop.f32.mrf.mxu0
        %v420 = vadd.f32 %v389, %v419
        %421 = vdwg.mxu0
        %422 = vmatpush.msra.mxu0 0.0
        %423 = vmatpush.msra.mxu0 0.0
        %424 = vmatpush.msra.mxu0 0.0
        %425 = vmatpush.msra.mxu0 0.0
        %426 = vmatpush.msra.mxu0 0.0
        %427 = vmatpush.msra.mxu0 0.0
        %428 = vmatpush.msra.mxu0 0.0
        %429 = vmatpush.msra.mxu0 0.0
        %430 = vmatpush.msra.mxu0 0.0
        %431 = vmatpush.msra.mxu0 0.0
        %432 = vmatpush.msra.mxu0 0.0
        %433 = vmatpush.msra.mxu0 0.0
        %434 = vmatpush.msra.mxu0 0.0
        %435 = vmatpush.msra.mxu0 0.0
        %436 = vmatpush.msra.mxu0 0.0
        %437 = vmatpush.msra.mxu0 %v400
        %438 = vmatmul.f32.gmra.mxu0 %v393
        %v439 = vpop.f32.mrf.mxu0
        %v440 = vadd.f32 %v389, %v439
        %441 = vdwg.mxu0
        %v442 = vmul.f32 %v420, 0.1
        %v443 = vmul.f32 %v440, 0.1
        %v444 = vmax.f32 %v420, %v442
        %v445 = vmax.f32 %v440, %v443
        %v446 = vadd.f32 %v382, %v444
        %v447 = vadd.f32 %v383, %v445
        %v448 = vmul.f32 %v446, 0.1
        %v449 = vmul.f32 %v447, 0.1
        %v450 = vmax.f32 %v446, %v448
        %v451 = vmax.f32 %v447, %v449
        %452 = vst [vmem:[%s295] sm:$0xff] %v450
        %453 = vst [vmem:[%s295 + $0x8] sm:$0xff] %v451
        %s454 = sand.u32 %s182, 1
        %s455 = scalar_lea.sflag [#allocation3], %s454
        %s456 = sand.u32 %s182, 1
        %s457 = smul.addr %s456, 16
        %s458 = scalar_lea.vmem [#allocation2], %s457
        // Predicated region
        $region45: #{tpu_custom_call.1} parent=43 // pred_check
          %p459 = pneg %p192
        $region46: #{tpu_custom_call.1} parent=43 // pred_check_branch
          %461 = sbr.rel (%p459) target = $region48
        $region47: #{tpu_custom_call.1} parent=43 // pred_region
          %s462 = smul.u32 2, %s25
          %464 = vsyncadd %s455, 0
          %s465 = smul.addr %s24, 2
          %s466 = sadd.s32 %s462, %s465
          %s467 = smul.addr %s466, 8
          %s468 = scalar_lea.hbm %s6, %s467
          %s470 = sshll.u32 %s458, 4
          %s471 = int_to_ptr.vmem [resolvable:$true] %s470
          %s472 = sshll.u32 %s468, 4
          %s473 = int_to_ptr.hbm [resolvable:$true] %s472
          %475 = dma.vmem_to_hbm [thread:$0]  %s471, 256, %s473, %s455
        $region48: #{tpu_custom_call.1} parent=43 // pred_fallthru
          _
      $region44: #{tpu_custom_call.1} parent=5 // pred_fallthru
        _
      %p476 = scmp.le.s32.totalorder 2, %s15
      // Predicated region
      $region49: #{tpu_custom_call.1} parent=5 // pred_check
        %p477 = pneg %p476
      $region50: #{tpu_custom_call.1} parent=5 // pred_check_branch
        %479 = sbr.rel (%p477) target = $region52
      $region51: #{tpu_custom_call.1} parent=5 // pred_region
        %s480 = ssub.s32 %s15, 2
        // Predicated region
        $region53: #{tpu_custom_call.1} parent=51 // pred_check
          %p481 = pneg %p198
        $region54: #{tpu_custom_call.1} parent=51 // pred_check_branch
          %483 = sbr.rel (%p481) target = $region56
        $region55: #{tpu_custom_call.1} parent=51 // pred_region
          %s484 = sand.u32 %s183, 1
          %s485 = scalar_lea.sflag [#allocation3], %s484
          %s486 = sand.u32 %s183, 1
          %s487 = smul.addr %s486, 16
          %s488 = scalar_lea.vmem [#allocation2], %s487
          %490 = dma.done %s485, 256
        $region56: #{tpu_custom_call.1} parent=51 // pred_fallthru
          _
      $region52: #{tpu_custom_call.1} parent=5 // pred_fallthru
        _
    $region6: #{tpu_custom_call.1} parent=1 // loop_footer
      %s19 = sadd.s32 1, %s15
    $region7: #{tpu_custom_call.1} parent=1 // loop_footer_branch
      %14 = sbr.rel target = $region3
    $region8: #{tpu_custom_call.1} parent=1 // loop_exit
      _
    %491 = vsyncpa [#allocation3], 1
    %s492 = scalar_lea.sflag [#allocation3], 1
    %493 = vsyncpa %s492, 1

</llo_original>
